<compile_context>
chip_gen: v7x
topology: tpu7x:2x2x1
jax: 0.10.0
libtpu: 0.0.40
codegen_flags: <defaults>
</compile_context>

<pallas_src>
import functools

import jax
import jax.numpy as jnp
from jax import lax
from jax.experimental import pallas as pl
from jax.experimental.pallas import tpu as pltpu


def _residual_conv1d_kernel(x_ref, halo_ref, w_ref, b_ref, out_ref):
    # x_ref:    (1, C, TL)    current length-tile of x (aligned block load)
    # halo_ref: (1, 1, C, 2)  [..., 0] = column just left of the tile (0 at seq start)
    #                         [..., 1] = column just right of the tile (0 at seq end)
    # w_ref:    (3, C, C)     w_ref[k] == weight[:, :, k]
    # b_ref:    (C, 1)        bias (f32)
    # out_ref:  (1, C, TL)
    TL = out_ref.shape[2]

    x = x_ref[0]                                  # (C, TL)
    lr = halo_ref[0, 0]                           # (C, 2)
    left = lr[:, 0:1]                             # (C, 1): x[:, j-1] for j == 0
    right = lr[:, 1:2]                            # (C, 1): x[:, j+1] for j == TL-1

    cdt = w_ref.dtype                             # MXU operand dtype (f32 or bf16)
    # Shift-by-one operands built in-register (one lane shift each); the halo
    # columns supply the value that enters at the tile boundary.  No HBM-side
    # misaligned access: the block load above is aligned.
    x_left = jnp.concatenate([left, x[:, :TL - 1]], axis=1).astype(cdt)   # x[:, j-1]
    x_ctr = x.astype(cdt)                                                 # x[:, j]
    x_right = jnp.concatenate([x[:, 1:], right], axis=1).astype(cdt)      # x[:, j+1]

    # Three MXU matmuls (cross-correlation taps), f32 accumulation.
    y = jnp.dot(w_ref[0], x_left, preferred_element_type=jnp.float32)
    y = y + jnp.dot(w_ref[1], x_ctr, preferred_element_type=jnp.float32)
    y = y + jnp.dot(w_ref[2], x_right, preferred_element_type=jnp.float32)

    # Fused epilogue: bias + residual, all in f32, single store.
    out_ref[0] = (y + b_ref[...] + x.astype(jnp.float32)).astype(out_ref.dtype)


def _choose_l_tile(L, target=512):
    """Largest multiple of 128 that divides L and is <= target; else whole L."""
    if L <= target:
        return L
    for tl in range(target - target % 128, 0, -128):
        if L % tl == 0:
            return tl
    return L


@functools.partial(jax.jit, static_argnames=("l_tile", "compute_dtype"))
def residual_conv1d(x, weight, bias, *, l_tile=None, compute_dtype=None):
    """y = Conv1d(C, C, 3, stride=1, padding=1)(x) + x  (NCL layout).

    x: (B, C, L) | weight: (C, C, 3) | bias: (C,)
    compute_dtype: dtype of the MXU operands (e.g. jnp.bfloat16 on v6e/v7x);
                   accumulation / bias / residual stay f32.
    """
    B, C, L = x.shape
    if compute_dtype is None:
        compute_dtype = x.dtype
    tl = _choose_l_tile(L) if l_tile is None else l_tile
    assert L % tl == 0 and (tl == L or tl % 128 == 0), (
        "l_tile must divide L and be a multiple of 128 (or equal L)")
    nt = L // tl

    # Tap-major weights (proven layout): w_k[k] = weight[:, :, k].
    w_k = jnp.transpose(weight, (2, 0, 1)).astype(compute_dtype)          # (3, C, C)
    b2d = bias.astype(jnp.float32).reshape(C, 1)                          # (C, 1)

    # Per-tile halo columns: halo[b, t, :, 0] = x[b, :, t*tl - 1] (0 for t == 0)
    #                        halo[b, t, :, 1] = x[b, :, (t+1)*tl] (0 for t == nt-1)
    if nt == 1:
        halo = jnp.zeros((B, 1, C, 2), x.dtype)
    else:
        zcol = jnp.zeros((B, C, 1), x.dtype)
        lcols = jnp.concatenate([zcol, x[:, :, tl - 1:L - 1:tl]], axis=2)  # (B, C, nt)
        rcols = jnp.concatenate([x[:, :, tl::tl], zcol], axis=2)           # (B, C, nt)
        halo = jnp.transpose(jnp.stack([lcols, rcols], axis=-1), (0, 2, 1, 3))  # (B, nt, C, 2)

    return pl.pallas_call(
        _residual_conv1d_kernel,
        out_shape=jax.ShapeDtypeStruct((B, C, L), x.dtype),
        grid_spec=pltpu.PrefetchScalarGridSpec(
            num_scalar_prefetch=0,
            grid=(B, nt),
            in_specs=[
                pl.BlockSpec((1, C, tl), lambda b, t: (b, 0, t)),        # x length-tile
                pl.BlockSpec((1, 1, C, 2), lambda b, t: (b, t, 0, 0)),   # halo columns
                pl.BlockSpec((3, C, C), lambda b, t: (0, 0, 0)),         # weights (resident)
                pl.BlockSpec((C, 1), lambda b, t: (0, 0)),               # bias (resident)
            ],
            out_specs=pl.BlockSpec((1, C, tl), lambda b, t: (b, 0, t)),
        ),
        compiler_params=pltpu.CompilerParams(
            dimension_semantics=("parallel", "parallel"),
            vmem_limit_bytes=64 * 1024 * 1024,
        ),
    )(x, halo, w_k, b2d)


def _reference(x, weight, bias):
    # PyTorch Conv1d == cross-correlation, NCW layout.
    y = lax.conv_general_dilated(
        x, weight, window_strides=(1,), padding=[(1, 1)],
        dimension_numbers=("NCH", "OIH", "NCH"),
    )
    return y + bias[None, :, None] + x


def _init_params(key, C):
    kw, kb = jax.random.split(key)
    fan_in = C * 3
    bound = 1.0 / jnp.sqrt(jnp.float32(fan_in))
    weight = jax.random.uniform(kw, (C, C, 3), jnp.float32, -bound, bound)
    bias = jax.random.uniform(kb, (C,), jnp.float32, -bound, bound)
    return weight, bias


if __name__ == "__main__":
    # Small shape implied by the module's forward: (batch, channels, length).
    key = jax.random.PRNGKey(0)
    kx, kp = jax.random.split(key)
    B, C, L = 2, 4, 16
    x = jax.random.normal(kx, (B, C, L), dtype=jnp.float32)
    weight, bias = _init_params(kp, C)

    y = jax.block_until_ready(residual_conv1d(x, weight, bias))
    y_ref = _reference(x, weight, bias)
    assert y.shape == (B, C, L)
    assert jnp.allclose(y, y_ref, atol=1e-4, rtol=1e-4), "mismatch (single-tile path)"

    # Second check exercising the L-tiled (multi-tile, cross-tile halo) path.
    key2 = jax.random.PRNGKey(1)
    kx2, kp2 = jax.random.split(key2)
    B2, C2, L2 = 2, 8, 256
    x2 = jax.random.normal(kx2, (B2, C2, L2), dtype=jnp.float32)
    w2, b2 = _init_params(kp2, C2)

    y2 = jax.block_until_ready(residual_conv1d(x2, w2, b2, l_tile=128))
    y2_ref = _reference(x2, w2, b2)
    assert jnp.allclose(y2, y2_ref, atol=1e-4, rtol=1e-4), "mismatch (L-tiled path)"

    # bf16 MXU operands (v6e/v7x fast path); accumulation stays f32.
    y2_bf16 = jax.block_until_ready(
        residual_conv1d(x2, w2, b2, l_tile=128, compute_dtype=jnp.bfloat16))
    assert jnp.allclose(y2_bf16, y2_ref, atol=1e-1, rtol=1e-1), "mismatch (bf16 MXU path)"

    print("KERNEL_OK")
</pallas_src>

<mosaic_0001>
module attributes {stable_mosaic.version = 11 : i64} {
  func.func @_residual_conv1d_kernel(%arg0: i32, %arg1: i32, %arg2: memref<1x4x16xf32, #tpu.memory_space<vmem>>, %arg3: memref<1x1x4x2xf32, #tpu.memory_space<vmem>>, %arg4: memref<3x4x4xf32, #tpu.memory_space<vmem>>, %arg5: memref<4x1xf32, #tpu.memory_space<vmem>>, %arg6: memref<1x4x16xf32, #tpu.memory_space<vmem>>) attributes {dimension_semantics = [#tpu.dimension_semantics<parallel>, #tpu.dimension_semantics<parallel>], iteration_bounds = array<i64: 2, 1>, scalar_prefetch = 0 : i64, scratch_operands = 0 : i64, tpu.core_type = #tpu.core_type<tc>, window_params = [{transform_indices = @transform_0, window_bounds = array<i64: 1, 4, 16>}, {transform_indices = @transform_1, window_bounds = array<i64: 1, 1, 4, 2>}, {pipeline_mode = #tpu.pipeline_mode<synchronous>, transform_indices = @transform_2, window_bounds = array<i64: 3, 4, 4>}, {pipeline_mode = #tpu.pipeline_mode<synchronous>, transform_indices = @transform_3, window_bounds = array<i64: 4, 1>}, {transform_indices = @transform_4, window_bounds = array<i64: 1, 4, 16>}]} {
    %c0 = arith.constant 0 : index
    %c0_0 = arith.constant 0 : index
    %c0_1 = arith.constant 0 : index
    %0 = vector.load %arg2[%c0, %c0_0, %c0_1] : memref<1x4x16xf32, #tpu.memory_space<vmem>>, vector<1x4x16xf32>
    %1 = vector.shape_cast %0 : vector<1x4x16xf32> to vector<4x16xf32>
    %c0_2 = arith.constant 0 : index
    %c0_3 = arith.constant 0 : index
    %c0_4 = arith.constant 0 : index
    %c0_5 = arith.constant 0 : index
    %2 = vector.load %arg3[%c0_2, %c0_3, %c0_4, %c0_5] : memref<1x1x4x2xf32, #tpu.memory_space<vmem>>, vector<1x1x4x2xf32>
    %3 = vector.shape_cast %2 : vector<1x1x4x2xf32> to vector<4x2xf32>
    %4 = vector.extract_strided_slice %3 {offsets = [0, 0], sizes = [4, 1], strides = [1, 1]} : vector<4x2xf32> to vector<4x1xf32>
    %5 = vector.extract_strided_slice %3 {offsets = [0, 1], sizes = [4, 1], strides = [1, 1]} : vector<4x2xf32> to vector<4x1xf32>
    %6 = vector.extract_strided_slice %1 {offsets = [0, 0], sizes = [4, 15], strides = [1, 1]} : vector<4x16xf32> to vector<4x15xf32>
    %7 = tpu.concatenate %4, %6 in 1 : vector<4x1xf32>, vector<4x15xf32> -> vector<4x16xf32>
    %8 = vector.extract_strided_slice %1 {offsets = [0, 1], sizes = [4, 15], strides = [1, 1]} : vector<4x16xf32> to vector<4x15xf32>
    %9 = tpu.concatenate %8, %5 in 1 : vector<4x15xf32>, vector<4x1xf32> -> vector<4x16xf32>
    %c0_6 = arith.constant 0 : index
    %c0_7 = arith.constant 0 : index
    %c0_8 = arith.constant 0 : index
    %10 = vector.load %arg4[%c0_6, %c0_7, %c0_8] : memref<3x4x4xf32, #tpu.memory_space<vmem>>, vector<1x4x4xf32>
    %11 = vector.shape_cast %10 : vector<1x4x4xf32> to vector<4x4xf32>
    %cst = arith.constant dense<0.000000e+00> : vector<4x16xf32>
    %12 = tpu.matmul %11, %7, %cst {dimension_numbers = #tpu.dot_dimension_numbers<[1], [0], [0], [1], [0, 0, 1, 1], [], []>} : vector<4x4xf32>, vector<4x16xf32>, vector<4x16xf32> -> vector<4x16xf32>
    %c1 = arith.constant 1 : index
    %c0_9 = arith.constant 0 : index
    %c0_10 = arith.constant 0 : index
    %13 = vector.load %arg4[%c1, %c0_9, %c0_10] : memref<3x4x4xf32, #tpu.memory_space<vmem>>, vector<1x4x4xf32>
    %14 = vector.shape_cast %13 : vector<1x4x4xf32> to vector<4x4xf32>
    %cst_11 = arith.constant dense<0.000000e+00> : vector<4x16xf32>
    %15 = tpu.matmul %14, %1, %cst_11 {dimension_numbers = #tpu.dot_dimension_numbers<[1], [0], [0], [1], [0, 0, 1, 1], [], []>} : vector<4x4xf32>, vector<4x16xf32>, vector<4x16xf32> -> vector<4x16xf32>
    %16 = arith.addf %12, %15 : vector<4x16xf32>
    %c2 = arith.constant 2 : index
    %c0_12 = arith.constant 0 : index
    %c0_13 = arith.constant 0 : index
    %17 = vector.load %arg4[%c2, %c0_12, %c0_13] : memref<3x4x4xf32, #tpu.memory_space<vmem>>, vector<1x4x4xf32>
    %18 = vector.shape_cast %17 : vector<1x4x4xf32> to vector<4x4xf32>
    %cst_14 = arith.constant dense<0.000000e+00> : vector<4x16xf32>
    %19 = tpu.matmul %18, %9, %cst_14 {dimension_numbers = #tpu.dot_dimension_numbers<[1], [0], [0], [1], [0, 0, 1, 1], [], []>} : vector<4x4xf32>, vector<4x16xf32>, vector<4x16xf32> -> vector<4x16xf32>
    %20 = arith.addf %16, %19 : vector<4x16xf32>
    %c0_15 = arith.constant 0 : index
    %c0_16 = arith.constant 0 : index
    %21 = vector.load %arg5[%c0_15, %c0_16] : memref<4x1xf32, #tpu.memory_space<vmem>>, vector<4x1xf32>
    %22 = vector.broadcast %21 : vector<4x1xf32> to vector<4x16xf32>
    %23 = arith.addf %20, %22 : vector<4x16xf32>
    %24 = arith.addf %23, %1 : vector<4x16xf32>
    %c0_17 = arith.constant 0 : index
    %c0_18 = arith.constant 0 : index
    %c0_19 = arith.constant 0 : index
    %25 = vector.load %arg6[%c0_17, %c0_18, %c0_19] : memref<1x4x16xf32, #tpu.memory_space<vmem>>, vector<1x4x16xf32>
    %26 = vector.shape_cast %25 : vector<1x4x16xf32> to vector<4x16xf32>
    %27 = vector.shape_cast %24 : vector<4x16xf32> to vector<1x4x16xf32>
    tpu.vector_store %arg6[%c0_17, %c0_18, %c0_19], %27 {strides = array<i32>} : memref<1x4x16xf32, #tpu.memory_space<vmem>>, vector<1x4x16xf32>,
    return
  }
  func.func @transform_0(%arg0: i32, %arg1: i32) -> (i32, i32, i32) {
    %c0_i32 = arith.constant 0 : i32
    %c0_i32_0 = arith.constant 0 : i32
    return %arg0, %c0_i32, %arg1 : i32, i32, i32
  }
  func.func @transform_1(%arg0: i32, %arg1: i32) -> (i32, i32, i32, i32) {
    %c0_i32 = arith.constant 0 : i32
    %c0_i32_0 = arith.constant 0 : i32
    %c0_i32_1 = arith.constant 0 : i32
    return %arg0, %arg1, %c0_i32, %c0_i32_0 : i32, i32, i32, i32
  }
  func.func @transform_2(%arg0: i32, %arg1: i32) -> (i32, i32, i32) {
    %c0_i32 = arith.constant 0 : i32
    %c0_i32_0 = arith.constant 0 : i32
    %c0_i32_1 = arith.constant 0 : i32
    %c0_i32_2 = arith.constant 0 : i32
    return %c0_i32, %c0_i32_0, %c0_i32_1 : i32, i32, i32
  }
  func.func @transform_3(%arg0: i32, %arg1: i32) -> (i32, i32) {
    %c0_i32 = arith.constant 0 : i32
    %c0_i32_0 = arith.constant 0 : i32
    %c0_i32_1 = arith.constant 0 : i32
    return %c0_i32, %c0_i32_0 : i32, i32
  }
  func.func @transform_4(%arg0: i32, %arg1: i32) -> (i32, i32, i32) {
    %c0_i32 = arith.constant 0 : i32
    %c0_i32_0 = arith.constant 0 : i32
    return %arg0, %c0_i32, %arg1 : i32, i32, i32
  }
}

</mosaic_0001>

<llo_original>
// kernel: residual_conv1d.1
$region0: #{residual_conv1d.1}
  #allocation0 [shape = 'u32[]', space=smem, size = 0x4, offset = 0x4, fixed_abs, tag = 'smem constant byte address 0x4 - core index']
  #allocation1 [shape = 'u32[144,128]{1,0:T(1,128)}', space=vmem, size = 0x12000, scoped, tag = 'internal scratch']
  %s0 = inlined_call_operand.hbm [shape: f32[2,4,16], index: 0, kind: input, shape index: {}]
  %s1 = inlined_call_operand.hbm [shape: f32[2,1,4,2], index: 1, kind: input, shape index: {}]
  %s2 = inlined_call_operand.hbm [shape: f32[3,4,4], index: 2, kind: input, shape index: {}]
  %s3 = inlined_call_operand.hbm [shape: f32[4,1], index: 3, kind: input, shape index: {}]
  %s4 = inlined_call_operand.hbm [shape: f32[2,4,16], index: 4, kind: output, shape index: {}]
  %s5 = sld [smem:[#allocation0]]
  $region65: #{residual_conv1d.1} parent=0
    _
  %s7 = ssub.s32 1, %s5
  %s8 = scalar_select 0, %s7, %s5
  $region1: #{residual_conv1d.1} parent=0
    #allocation2 [shape = 'u8[4096]{0}', space=vmem, size = 0x1000, scoped, tag = 'input window, operand 0']
    #allocation3 [shape = 's32[2]{0}', space=sflag, size = 0x8, scoped, tag = 'scoped memory for residual_conv1d.1']
    #allocation4 [shape = 's32[2]{0}', space=sflag, size = 0x8, scoped, tag = 'scoped memory for residual_conv1d.1']
    #allocation5 [shape = 'u8[4096]{0}', space=vmem, size = 0x1000, scoped, tag = 'input window, operand 1']
    #allocation6 [shape = 's32[2]{0}', space=sflag, size = 0x8, scoped, tag = 'scoped memory for residual_conv1d.1']
    #allocation7 [shape = 'u8[6144]{0}', space=vmem, size = 0x1800, scoped, tag = 'input window, operand 2, single buffered']
    #allocation8 [shape = 'u8[2048]{0}', space=vmem, size = 0x800, scoped, tag = 'input window, operand 3, single buffered']
    #allocation9 [shape = 's32[1]{0}', space=sflag, size = 0x4, scoped, tag = 'scoped memory for residual_conv1d.1']
    #allocation10 [shape = 'u8[4096]{0}', space=vmem, size = 0x1000, scoped, tag = 'output window, operand 0']
    %9 = vsyncpa [#allocation3], 0
    %s10 = scalar_lea.sflag [#allocation3], 1
    %11 = vsyncpa %s10, 0
    %12 = vsyncpa [#allocation6], 0
    %s13 = scalar_lea.sflag [#allocation6], 1
    %14 = vsyncpa %s13, 0
    %15 = vsyncpa [#allocation9], 0
    %16 = vsyncpa [#allocation4], 0
    %s17 = scalar_lea.sflag [#allocation4], 1
    %18 = vsyncpa %s17, 0
    loop: start=0, step=1, limit=4
    $region2: #{residual_conv1d.1} parent=1 // loop_pre_header
      _
    $region3: #{residual_conv1d.1} parent=1 // loop_header
      %s20 = sphi 0, %s24
      %p21 = scmp.ge.s32.totalorder %s20, 4
      %s27 = sphi 0, %s39
      %s28 = sphi 0, %s35
      %s29 = sphi 0, %s27
      %s30 = sphi 0, %s28
      %s31 = sphi 0, %s29
      %s32 = sphi 0, %s30
      %s44 = sphi 0, %s46
      %s47 = sphi 0, %s44
      %s48 = sphi 0, %s47
      %s64 = sphi 0, %s48
      %s72 = sphi 0, %s74
      %s75 = sphi 0, %s72
      %s76 = sphi 0, %s75
      %s92 = sphi 0, %s76
      %s96 = sphi 0, %s96
      %s98 = sphi 0, %s96
      %s99 = sphi 0, %s98
      %s113 = sphi 0, %s99
      %s117 = sphi 0, %s117
      %s119 = sphi 0, %s117
      %s120 = sphi 0, %s119
      %s134 = sphi 0, %s120
      %s142 = sphi 0, %s144
      %s145 = sphi 0, %s142
      %s146 = sphi 0, %s145
      %s162 = sphi 0, %s146
    $region4: #{residual_conv1d.1} parent=1 // loop_header_branch
      %23 = sbr.rel (%p21) target = $region8
    $region5: #{residual_conv1d.1} parent=1 // loop_body
      %s25 = ssub.s32 %s20, 1
      %s26 = ssub.s32 %s20, 2
      %s33 = sadd.s32 1, %s28
      %p34 = scmp.ge.s32.totalorder %s33, 1
      %s35 = scalar_select %p34, 0, %s33
      %s36 = sadd.s32 1, %s27
      %s37 = scalar_select %p34, %s36, %s27
      %p38 = scmp.ge.s32.totalorder %s37, 2
      %s39 = scalar_select %p38, 0, %s37
      %s40 = ssub.s32 %s27, %s39
      %s41 = ssub.s32 %s28, %s35
      %s42 = sor.u32 %s40, %s41
      %p43 = scmp.eq.s32.totalorder %s42, 0
      %s45 = sadd.s32 %s44, 1
      %s46 = scalar_select %p43, %s44, %s45
      %p49 = pneg %p43
      %p50 = scmp.eq.s32.totalorder %s20, 1
      %p51 = por %p49, %p50
      %p52 = scmp.ne.s32.totalorder %s44, %s47
      %p53 = scmp.eq.s32.totalorder %s20, 0
      %p54 = por %p52, %p53
      %p55 = scmp.ne.s32.totalorder %s44, %s47
      %p56 = scmp.eq.s32.totalorder %s25, 1
      %p57 = por %p55, %p56
      %p58 = scmp.ne.s32.totalorder %s47, %s48
      %p59 = scmp.eq.s32.totalorder %s25, 0
      %p60 = por %p58, %p59
      %p61 = scmp.ne.s32.totalorder %s47, %s48
      %p62 = scmp.eq.s32.totalorder %s26, 1
      %p63 = por %p61, %p62
      %p65 = scmp.ne.s32.totalorder %s48, %s64
      %p66 = scmp.eq.s32.totalorder %s26, 0
      %p67 = por %p65, %p66
      %s68 = ssub.s32 %s27, %s39
      %s69 = ssub.s32 %s28, %s35
      %s70 = sor.u32 %s68, %s69
      %p71 = scmp.eq.s32.totalorder %s70, 0
      %s73 = sadd.s32 %s72, 1
      %s74 = scalar_select %p71, %s72, %s73
      %p77 = pneg %p71
      %p78 = scmp.eq.s32.totalorder %s20, 1
      %p79 = por %p77, %p78
      %p80 = scmp.ne.s32.totalorder %s72, %s75
      %p81 = scmp.eq.s32.totalorder %s20, 0
      %p82 = por %p80, %p81
      %p83 = scmp.ne.s32.totalorder %s72, %s75
      %p84 = scmp.eq.s32.totalorder %s25, 1
      %p85 = por %p83, %p84
      %p86 = scmp.ne.s32.totalorder %s75, %s76
      %p87 = scmp.eq.s32.totalorder %s25, 0
      %p88 = por %p86, %p87
      %p89 = scmp.ne.s32.totalorder %s75, %s76
      %p90 = scmp.eq.s32.totalorder %s26, 1
      %p91 = por %p89, %p90
      %p93 = scmp.ne.s32.totalorder %s76, %s92
      %p94 = scmp.eq.s32.totalorder %s26, 0
      %p95 = por %p93, %p94
      %s97 = sadd.s32 %s96, 1
      %p100 = scmp.eq.s32.totalorder %s20, 1
      %p101 = scmp.ne.s32.totalorder %s96, %s98
      %p102 = scmp.eq.s32.totalorder %s20, 0
      %p103 = por %p101, %p102
      %p104 = scmp.ne.s32.totalorder %s96, %s98
      %p105 = scmp.eq.s32.totalorder %s25, 1
      %p106 = por %p104, %p105
      %p107 = scmp.ne.s32.totalorder %s98, %s99
      %p108 = scmp.eq.s32.totalorder %s25, 0
      %p109 = por %p107, %p108
      %p110 = scmp.ne.s32.totalorder %s98, %s99
      %p111 = scmp.eq.s32.totalorder %s26, 1
      %p112 = por %p110, %p111
      %p114 = scmp.ne.s32.totalorder %s99, %s113
      %p115 = scmp.eq.s32.totalorder %s26, 0
      %p116 = por %p114, %p115
      %s118 = sadd.s32 %s117, 1
      %p121 = scmp.eq.s32.totalorder %s20, 1
      %p122 = scmp.ne.s32.totalorder %s117, %s119
      %p123 = scmp.eq.s32.totalorder %s20, 0
      %p124 = por %p122, %p123
      %p125 = scmp.ne.s32.totalorder %s117, %s119
      %p126 = scmp.eq.s32.totalorder %s25, 1
      %p127 = por %p125, %p126
      %p128 = scmp.ne.s32.totalorder %s119, %s120
      %p129 = scmp.eq.s32.totalorder %s25, 0
      %p130 = por %p128, %p129
      %p131 = scmp.ne.s32.totalorder %s119, %s120
      %p132 = scmp.eq.s32.totalorder %s26, 1
      %p133 = por %p131, %p132
      %p135 = scmp.ne.s32.totalorder %s120, %s134
      %p136 = scmp.eq.s32.totalorder %s26, 0
      %p137 = por %p135, %p136
      %s138 = ssub.s32 %s27, %s39
      %s139 = ssub.s32 %s28, %s35
      %s140 = sor.u32 %s138, %s139
      %p141 = scmp.eq.s32.totalorder %s140, 0
      %s143 = sadd.s32 %s142, 1
      %s144 = scalar_select %p141, %s142, %s143
      %p147 = pneg %p141
      %p148 = scmp.eq.s32.totalorder %s20, 1
      %p149 = por %p147, %p148
      %p150 = scmp.ne.s32.totalorder %s142, %s145
      %p151 = scmp.eq.s32.totalorder %s20, 0
      %p152 = por %p150, %p151
      %p153 = scmp.ne.s32.totalorder %s142, %s145
      %p154 = scmp.eq.s32.totalorder %s25, 1
      %p155 = por %p153, %p154
      %p156 = scmp.ne.s32.totalorder %s145, %s146
      %p157 = scmp.eq.s32.totalorder %s25, 0
      %p158 = por %p156, %p157
      %p159 = scmp.ne.s32.totalorder %s145, %s146
      %p160 = scmp.eq.s32.totalorder %s26, 1
      %p161 = por %p159, %p160
      %p163 = scmp.ne.s32.totalorder %s146, %s162
      %p164 = scmp.eq.s32.totalorder %s26, 0
      %p165 = por %p163, %p164
      %p166 = scmp.le.s32.totalorder 1, %s20
      %p167 = scmp.lt.s32.totalorder %s20, 3
      %p168 = pnand %p166, %p167
      %p169 = pneg %p168
      // Predicated region
      $region9: #{residual_conv1d.1} parent=5 // pred_check
        _
      $region10: #{residual_conv1d.1} parent=5 // pred_check_branch
        %171 = sbr.rel (%p168) target = $region12
      $region11: #{residual_conv1d.1} parent=5 // pred_region
        %s172 = ssub.s32 %s20, 1
        // Predicated region
        $region13: #{residual_conv1d.1} parent=11 // pred_check
          %p173 = pneg %p109
        $region14: #{residual_conv1d.1} parent=11 // pred_check_branch
          %175 = sbr.rel (%p173) target = $region16
        $region15: #{residual_conv1d.1} parent=11 // pred_region
          %s177 = ssub.s32 192, 192
          %178 = vsyncadd [#allocation6], %s177
          %s179 = sshll.u32 [#allocation7], 4
          %s180 = int_to_ptr.vmem [resolvable:$true] %s179
          %185 = dma.hbm_to_vmem [thread:$0]  %s2, 192, %s180, [#allocation6], 64, 64, 4
        $region16: #{residual_conv1d.1} parent=11 // pred_fallthru
          _
        // Predicated region
        $region17: #{residual_conv1d.1} parent=11 // pred_check
          %p186 = pneg %p130
        $region18: #{residual_conv1d.1} parent=11 // pred_check_branch
          %188 = sbr.rel (%p186) target = $region20
        $region19: #{residual_conv1d.1} parent=11 // pred_region
          %s190 = ssub.s32 64, 64
          %191 = vsyncadd [#allocation9], %s190
          %s193 = sshll.u32 [#allocation8], 4
          %s194 = int_to_ptr.vmem [resolvable:$true] %s193
          %196 = dma.hbm_to_vmem [thread:$0]  %s3, 64, %s194, [#allocation9]
        $region20: #{residual_conv1d.1} parent=11 // pred_fallthru
          _
      $region12: #{residual_conv1d.1} parent=5 // pred_fallthru
        _
      %p197 = scmp.lt.s32.totalorder %s20, 2
      // Predicated region
      $region21: #{residual_conv1d.1} parent=5 // pred_check
        %p198 = pneg %p197
      $region22: #{residual_conv1d.1} parent=5 // pred_check_branch
        %200 = sbr.rel (%p198) target = $region24
      $region23: #{residual_conv1d.1} parent=5 // pred_region
        // Predicated region
        $region25: #{residual_conv1d.1} parent=23 // pred_check
          %p201 = pneg %p54
        $region26: #{residual_conv1d.1} parent=23 // pred_check_branch
          %203 = sbr.rel (%p201) target = $region28
        $region27: #{residual_conv1d.1} parent=23 // pred_region
          %s204 = sand.u32 %s44, 1
          %s205 = scalar_lea.sflag [#allocation3], %s204
          %s206 = sand.u32 %s44, 1
          %s207 = smul.addr %s206, 4
          %s208 = scalar_lea.vmem [#allocation2], %s207
          %s210 = ssub.s32 64, 64
          %211 = vsyncadd %s205, %s210
          %s212 = sadd.s32 %s28, %s27
          %s213 = smul.addr %s212, 64
          %s214 = scalar_lea.hbm %s0, %s213
          %s216 = sshll.u32 %s208, 4
          %s217 = int_to_ptr.vmem [resolvable:$true] %s216
          %219 = dma.hbm_to_vmem [thread:$0]  %s214, 64, %s217, %s205
        $region28: #{residual_conv1d.1} parent=23 // pred_fallthru
          _
        // Predicated region
        $region29: #{residual_conv1d.1} parent=23 // pred_check
          %p220 = pneg %p82
        $region30: #{residual_conv1d.1} parent=23 // pred_check_branch
          %222 = sbr.rel (%p220) target = $region32
        $region31: #{residual_conv1d.1} parent=23 // pred_region
          %s223 = sand.u32 %s20, 1
          %s224 = scalar_lea.sflag [#allocation6], %s223
          %s225 = sand.u32 %s72, 1
          %s226 = smul.addr %s225, 4
          %s227 = scalar_lea.vmem [#allocation5], %s226
          %s229 = ssub.s32 64, 64
          %230 = vsyncadd %s224, %s229
          %s231 = sadd.s32 %s28, %s27
          %s232 = smul.addr %s231, 64
          %s233 = scalar_lea.hbm %s1, %s232
          %s235 = sshll.u32 %s227, 4
          %s236 = int_to_ptr.vmem [resolvable:$true] %s235
          %238 = dma.hbm_to_vmem [thread:$0]  %s233, 64, %s236, %s224
        $region32: #{residual_conv1d.1} parent=23 // pred_fallthru
          _
      $region24: #{residual_conv1d.1} parent=5 // pred_fallthru
        _
      %p239 = scmp.le.s32.totalorder 1, %s20
      %p240 = scmp.lt.s32.totalorder %s20, 3
      %p241 = pnand %p239, %p240
      %p242 = pneg %p241
      // Predicated region
      $region33: #{residual_conv1d.1} parent=5 // pred_check
        _
      $region34: #{residual_conv1d.1} parent=5 // pred_check_branch
        %244 = sbr.rel (%p241) target = $region36
      $region35: #{residual_conv1d.1} parent=5 // pred_region
        %s245 = ssub.s32 %s20, 1
        %s246 = sand.u32 %s47, 1
        %s247 = scalar_lea.sflag [#allocation3], %s246
        %s248 = sand.u32 %s47, 1
        %s249 = smul.addr %s248, 4
        %s250 = scalar_lea.vmem [#allocation2], %s249
        // Predicated region
        $region37: #{residual_conv1d.1} parent=35 // pred_check
          %p251 = pneg %p60
        $region38: #{residual_conv1d.1} parent=35 // pred_check_branch
          %253 = sbr.rel (%p251) target = $region40
        $region39: #{residual_conv1d.1} parent=35 // pred_region
          %254 = dma.done %s247, 64
        $region40: #{residual_conv1d.1} parent=35 // pred_fallthru
          _
        %s255 = sand.u32 %s25, 1
        %s256 = scalar_lea.sflag [#allocation6], %s255
        %s257 = sand.u32 %s75, 1
        %s258 = smul.addr %s257, 4
        %s259 = scalar_lea.vmem [#allocation5], %s258
        // Predicated region
        $region41: #{residual_conv1d.1} parent=35 // pred_check
          %p260 = pneg %p88
        $region42: #{residual_conv1d.1} parent=35 // pred_check_branch
          %262 = sbr.rel (%p260) target = $region44
        $region43: #{residual_conv1d.1} parent=35 // pred_region
          %263 = dma.done %s256, 64
        $region44: #{residual_conv1d.1} parent=35 // pred_fallthru
          _
        // Predicated region
        $region45: #{residual_conv1d.1} parent=35 // pred_check
          %p264 = pneg %p109
        $region46: #{residual_conv1d.1} parent=35 // pred_check_branch
          %266 = sbr.rel (%p264) target = $region48
        $region47: #{residual_conv1d.1} parent=35 // pred_region
          %267 = dma.done [#allocation6], 192
        $region48: #{residual_conv1d.1} parent=35 // pred_fallthru
          _
        // Predicated region
        $region49: #{residual_conv1d.1} parent=35 // pred_check
          %p268 = pneg %p130
        $region50: #{residual_conv1d.1} parent=35 // pred_check_branch
          %270 = sbr.rel (%p268) target = $region52
        $region51: #{residual_conv1d.1} parent=35 // pred_region
          %271 = dma.done [#allocation9], 64
        $region52: #{residual_conv1d.1} parent=35 // pred_fallthru
          _
        %s272 = sand.u32 %s47, 1
        %s273 = scalar_lea.sflag [#allocation3], %s272
        %s274 = sand.u32 %s47, 1
        %s275 = smul.addr %s274, 4
        %s276 = scalar_lea.vmem [#allocation2], %s275
        %p277 = pneg %p60
        %p278 = pneg %p57
        %s279 = sand.u32 %s25, 1
        %s280 = scalar_lea.sflag [#allocation6], %s279
        %s281 = sand.u32 %s75, 1
        %s282 = smul.addr %s281, 4
        %s283 = scalar_lea.vmem [#allocation5], %s282
        %p284 = pneg %p88
        %p285 = pneg %p85
        %p286 = pneg %p109
        %p287 = pneg %p106
        %p288 = pneg %p130
        %p289 = pneg %p127
        %p290 = pneg %p158
        %p291 = pneg %p155
        %s292 = sand.u32 %s145, 1
        %s293 = scalar_lea.sflag [#allocation4], %s292
        %s294 = sand.u32 %s145, 1
        %s295 = smul.addr %s294, 4
        %s296 = scalar_lea.vmem [#allocation10], %s295
        %v297 = vld [vmem:[%s250] sm:$0xf]
        %v298 = vld [vmem:[%s259] sm:$0xf]
        %300 = vrot.lane.b32.xlu0 %v297, 1
        %v301 = vpop.permute.xlu0 %300
        %vm303 = vcmask 7168
        %v304 = vsel %vm303, %v298, %v301
        %305 = vrot.lane.b32.xlu0 %v297, 127
        %v306 = vpop.permute.xlu0 %305
        %309 = vrot.lane.b32.xlu0 %v298, 14
        %v310 = vpop.permute.xlu0 %309
        %vm312 = vcmask 121856
        %v313 = vsel %vm312, %v306, %v310
        %v314 = vld [vmem:[#allocation7] sm:$0xf]
        %s315 = scalar_lea.vmem [#allocation7], 4
        %v316 = vld [vmem:[%s315] sm:$0xf]
        %vm317 = vcmask 31744
        %v319 = vsel %vm317, %v316, 0
        %vm321 = vcmask 1043456
        %v322 = vsel %vm321, %v297, 0
        %324 = vmatprep.subr.mxu0 0.0
        %325 = vmatpush1.msra.mxu0 %v322
        %326 = vmatprep.subr.mxu0 0.0
        %327 = vmatpush1.msra.mxu0 0.0
        %328 = vmatprep.subr.mxu0 0.0
        %329 = vmatpush1.msra.mxu0 0.0
        %330 = vmatprep.subr.mxu0 0.0
        %331 = vmatpush1.msra.mxu0 0.0
        %332 = vmatprep.subr.mxu0 0.0
        %333 = vmatpush1.msra.mxu0 0.0
        %334 = vmatprep.subr.mxu0 0.0
        %335 = vmatpush1.msra.mxu0 0.0
        %336 = vmatprep.subr.mxu0 0.0
        %337 = vmatpush1.msra.mxu0 0.0
        %338 = vmatprep.subr.mxu0 0.0
        %339 = vmatpush1.msra.mxu0 0.0
        %340 = vmatprep.subr.mxu0 0.0
        %341 = vmatpush1.msra.mxu0 0.0
        %342 = vmatprep.subr.mxu0 0.0
        %343 = vmatpush1.msra.mxu0 0.0
        %344 = vmatprep.subr.mxu0 0.0
        %345 = vmatpush1.msra.mxu0 0.0
        %346 = vmatprep.subr.mxu0 0.0
        %347 = vmatpush1.msra.mxu0 0.0
        %348 = vmatprep.subr.mxu0 0.0
        %349 = vmatpush1.msra.mxu0 0.0
        %350 = vmatprep.subr.mxu0 0.0
        %351 = vmatpush1.msra.mxu0 0.0
        %352 = vmatprep.subr.mxu0 0.0
        %353 = vmatpush1.msra.mxu0 0.0
        %354 = vmatprep.subr.mxu0 0.0
        %355 = vmatpush1.msra.mxu0 0.0
        %356 = vmatprep.subr.mxu0 0.0
        %357 = vmatpush1.msra.mxu0 0.0
        %358 = vmatprep.subr.mxu0 0.0
        %359 = vmatpush1.msra.mxu0 0.0
        %360 = vmatprep.subr.mxu0 0.0
        %361 = vmatpush1.msra.mxu0 0.0
        %362 = vmatprep.subr.mxu0 0.0
        %363 = vmatpush1.msra.mxu0 0.0
        %364 = vmatprep.subr.mxu0 0.0
        %365 = vmatpush1.msra.mxu0 0.0
        %366 = vmatprep.subr.mxu0 0.0
        %367 = vmatpush1.msra.mxu0 0.0
        %368 = vmatprep.subr.mxu0 0.0
        %369 = vmatpush1.msra.mxu0 0.0
        %370 = vmatprep.subr.mxu0 0.0
        %371 = vmatpush1.msra.mxu0 0.0
        %372 = vmatprep.subr.mxu0 0.0
        %373 = vmatpush1.msra.mxu0 0.0
        %374 = vmatprep.subr.mxu0 0.0
        %375 = vmatpush1.msra.mxu0 0.0
        %376 = vmatprep.subr.mxu0 0.0
        %377 = vmatpush1.msra.mxu0 0.0
        %378 = vmatprep.subr.mxu0 0.0
        %379 = vmatpush1.msra.mxu0 0.0
        %380 = vmatprep.subr.mxu0 0.0
        %381 = vmatpush1.msra.mxu0 0.0
        %382 = vmatprep.subr.mxu0 0.0
        %383 = vmatpush1.msra.mxu0 0.0
        %384 = vmatprep.subr.mxu0 0.0
        %385 = vmatpush1.msra.mxu0 0.0
        %386 = vmatprep.subr.mxu0 0.0
        %387 = vmatpush1.msra.mxu0 0.0
        %388 = vmatprep.mubr.f32.mxu0 0.0
        %389 = vmatmul.mubr.f32.gmra.mrb[0].mxu0 %v319
        %v390 = vpop.f32.mrb[0].mxu0
        %v391 = vadd.f32 0.0, %v390
        %v392 = vpop.f32.mrb[0].mxu0
        %393 = vdwg.mxu0
        %v395 = vsel %vm317, %v314, 0
        %v398 = vsel %vm321, %v304, 0
        %400 = vmatprep.subr.mxu0 0.0
        %401 = vmatpush1.msra.mxu0 %v398
        %402 = vmatprep.subr.mxu0 0.0
        %403 = vmatpush1.msra.mxu0 0.0
        %404 = vmatprep.subr.mxu0 0.0
        %405 = vmatpush1.msra.mxu0 0.0
        %406 = vmatprep.subr.mxu0 0.0
        %407 = vmatpush1.msra.mxu0 0.0
        %408 = vmatprep.subr.mxu0 0.0
        %409 = vmatpush1.msra.mxu0 0.0
        %410 = vmatprep.subr.mxu0 0.0
        %411 = vmatpush1.msra.mxu0 0.0
        %412 = vmatprep.subr.mxu0 0.0
        %413 = vmatpush1.msra.mxu0 0.0
        %414 = vmatprep.subr.mxu0 0.0
        %415 = vmatpush1.msra.mxu0 0.0
        %416 = vmatprep.subr.mxu0 0.0
        %417 = vmatpush1.msra.mxu0 0.0
        %418 = vmatprep.subr.mxu0 0.0
        %419 = vmatpush1.msra.mxu0 0.0
        %420 = vmatprep.subr.mxu0 0.0
        %421 = vmatpush1.msra.mxu0 0.0
        %422 = vmatprep.subr.mxu0 0.0
        %423 = vmatpush1.msra.mxu0 0.0
        %424 = vmatprep.subr.mxu0 0.0
        %425 = vmatpush1.msra.mxu0 0.0
        %426 = vmatprep.subr.mxu0 0.0
        %427 = vmatpush1.msra.mxu0 0.0
        %428 = vmatprep.subr.mxu0 0.0
        %429 = vmatpush1.msra.mxu0 0.0
        %430 = vmatprep.subr.mxu0 0.0
        %431 = vmatpush1.msra.mxu0 0.0
        %432 = vmatprep.subr.mxu0 0.0
        %433 = vmatpush1.msra.mxu0 0.0
        %434 = vmatprep.subr.mxu0 0.0
        %435 = vmatpush1.msra.mxu0 0.0
        %436 = vmatprep.subr.mxu0 0.0
        %437 = vmatpush1.msra.mxu0 0.0
        %438 = vmatprep.subr.mxu0 0.0
        %439 = vmatpush1.msra.mxu0 0.0
        %440 = vmatprep.subr.mxu0 0.0
        %441 = vmatpush1.msra.mxu0 0.0
        %442 = vmatprep.subr.mxu0 0.0
        %443 = vmatpush1.msra.mxu0 0.0
        %444 = vmatprep.subr.mxu0 0.0
        %445 = vmatpush1.msra.mxu0 0.0
        %446 = vmatprep.subr.mxu0 0.0
        %447 = vmatpush1.msra.mxu0 0.0
        %448 = vmatprep.subr.mxu0 0.0
        %449 = vmatpush1.msra.mxu0 0.0
        %450 = vmatprep.subr.mxu0 0.0
        %451 = vmatpush1.msra.mxu0 0.0
        %452 = vmatprep.subr.mxu0 0.0
        %453 = vmatpush1.msra.mxu0 0.0
        %454 = vmatprep.subr.mxu0 0.0
        %455 = vmatpush1.msra.mxu0 0.0
        %456 = vmatprep.subr.mxu0 0.0
        %457 = vmatpush1.msra.mxu0 0.0
        %458 = vmatprep.subr.mxu0 0.0
        %459 = vmatpush1.msra.mxu0 0.0
        %460 = vmatprep.subr.mxu0 0.0
        %461 = vmatpush1.msra.mxu0 0.0
        %462 = vmatprep.subr.mxu0 0.0
        %463 = vmatpush1.msra.mxu0 0.0
        %464 = vmatprep.mubr.f32.mxu0 0.0
        %465 = vmatmul.mubr.f32.gmra.mrb[0].mxu0 %v395
        %v466 = vpop.f32.mrb[0].mxu0
        %v467 = vadd.f32 %v391, %v466
        %v468 = vpop.f32.mrb[0].mxu0
        %469 = vdwg.mxu0
        %s470 = scalar_lea.vmem [#allocation7], 8
        %v471 = vld [vmem:[%s470] sm:$0xf]
        %v473 = vsel %vm317, %v471, 0
        %v476 = vsel %vm321, %v313, 0
        %478 = vmatprep.subr.mxu0 0.0
        %479 = vmatpush1.msra.mxu0 %v476
        %480 = vmatprep.subr.mxu0 0.0
        %481 = vmatpush1.msra.mxu0 0.0
        %482 = vmatprep.subr.mxu0 0.0
        %483 = vmatpush1.msra.mxu0 0.0
        %484 = vmatprep.subr.mxu0 0.0
        %485 = vmatpush1.msra.mxu0 0.0
        %486 = vmatprep.subr.mxu0 0.0
        %487 = vmatpush1.msra.mxu0 0.0
        %488 = vmatprep.subr.mxu0 0.0
        %489 = vmatpush1.msra.mxu0 0.0
        %490 = vmatprep.subr.mxu0 0.0
        %491 = vmatpush1.msra.mxu0 0.0
        %492 = vmatprep.subr.mxu0 0.0
        %493 = vmatpush1.msra.mxu0 0.0
        %494 = vmatprep.subr.mxu0 0.0
        %495 = vmatpush1.msra.mxu0 0.0
        %496 = vmatprep.subr.mxu0 0.0
        %497 = vmatpush1.msra.mxu0 0.0
        %498 = vmatprep.subr.mxu0 0.0
        %499 = vmatpush1.msra.mxu0 0.0
        %500 = vmatprep.subr.mxu0 0.0
        %501 = vmatpush1.msra.mxu0 0.0
        %502 = vmatprep.subr.mxu0 0.0
        %503 = vmatpush1.msra.mxu0 0.0
        %504 = vmatprep.subr.mxu0 0.0
        %505 = vmatpush1.msra.mxu0 0.0
        %506 = vmatprep.subr.mxu0 0.0
        %507 = vmatpush1.msra.mxu0 0.0
        %508 = vmatprep.subr.mxu0 0.0
        %509 = vmatpush1.msra.mxu0 0.0
        %510 = vmatprep.subr.mxu0 0.0
        %511 = vmatpush1.msra.mxu0 0.0
        %512 = vmatprep.subr.mxu0 0.0
        %513 = vmatpush1.msra.mxu0 0.0
        %514 = vmatprep.subr.mxu0 0.0
        %515 = vmatpush1.msra.mxu0 0.0
        %516 = vmatprep.subr.mxu0 0.0
        %517 = vmatpush1.msra.mxu0 0.0
        %518 = vmatprep.subr.mxu0 0.0
        %519 = vmatpush1.msra.mxu0 0.0
        %520 = vmatprep.subr.mxu0 0.0
        %521 = vmatpush1.msra.mxu0 0.0
        %522 = vmatprep.subr.mxu0 0.0
        %523 = vmatpush1.msra.mxu0 0.0
        %524 = vmatprep.subr.mxu0 0.0
        %525 = vmatpush1.msra.mxu0 0.0
        %526 = vmatprep.subr.mxu0 0.0
        %527 = vmatpush1.msra.mxu0 0.0
        %528 = vmatprep.subr.mxu0 0.0
        %529 = vmatpush1.msra.mxu0 0.0
        %530 = vmatprep.subr.mxu0 0.0
        %531 = vmatpush1.msra.mxu0 0.0
        %532 = vmatprep.subr.mxu0 0.0
        %533 = vmatpush1.msra.mxu0 0.0
        %534 = vmatprep.subr.mxu0 0.0
        %535 = vmatpush1.msra.mxu0 0.0
        %536 = vmatprep.subr.mxu0 0.0
        %537 = vmatpush1.msra.mxu0 0.0
        %538 = vmatprep.subr.mxu0 0.0
        %539 = vmatpush1.msra.mxu0 0.0
        %540 = vmatprep.subr.mxu0 0.0
        %541 = vmatpush1.msra.mxu0 0.0
        %542 = vmatprep.mubr.f32.mxu0 0.0
        %543 = vmatmul.mubr.f32.gmra.mrb[0].mxu0 %v473
        %v544 = vpop.f32.mrb[0].mxu0
        %v545 = vadd.f32 0.0, %v544
        %v546 = vpop.f32.mrb[0].mxu0
        %547 = vdwg.mxu0
        %v548 = vadd.f32 %v467, %v545
        %v549 = vld [vmem:[#allocation8] sm:$0xf]
        %551 = vset.pattern.permute.xlu0 0
        %552 = vperm.xlu0 %551, %v549
        %v553 = vpop.permute.xlu0 %552
        %v555 = vadd.f32 %v548, %v553
        %v556 = vadd.f32 %v555, %v297
        %vm557 = vcmask 125952
        %558 = vst.msk [vmem:[%s296] sm:$0xf] %vm557, %v556
        %s559 = sand.u32 %s145, 1
        %s560 = scalar_lea.sflag [#allocation4], %s559
        %s561 = sand.u32 %s145, 1
        %s562 = smul.addr %s561, 4
        %s563 = scalar_lea.vmem [#allocation10], %s562
        // Predicated region
        $region53: #{residual_conv1d.1} parent=35 // pred_check
          %p564 = pneg %p155
        $region54: #{residual_conv1d.1} parent=35 // pred_check_branch
          %566 = sbr.rel (%p564) target = $region56
        $region55: #{residual_conv1d.1} parent=35 // pred_region
          %s568 = ssub.s32 64, 64
          %569 = vsyncadd %s560, %s568
          %s570 = sadd.s32 %s30, %s29
          %s571 = smul.addr %s570, 64
          %s572 = scalar_lea.hbm %s4, %s571
          %s574 = sshll.u32 %s563, 4
          %s575 = int_to_ptr.vmem [resolvable:$true] %s574
          %577 = dma.vmem_to_hbm [thread:$0]  %s575, 64, %s572, %s560
        $region56: #{residual_conv1d.1} parent=35 // pred_fallthru
          _
      $region36: #{residual_conv1d.1} parent=5 // pred_fallthru
        _
      %p578 = scmp.le.s32.totalorder 2, %s20
      // Predicated region
      $region57: #{residual_conv1d.1} parent=5 // pred_check
        %p579 = pneg %p578
      $region58: #{residual_conv1d.1} parent=5 // pred_check_branch
        %581 = sbr.rel (%p579) target = $region60
      $region59: #{residual_conv1d.1} parent=5 // pred_region
        %s582 = ssub.s32 %s20, 2
        // Predicated region
        $region61: #{residual_conv1d.1} parent=59 // pred_check
          %p583 = pneg %p161
        $region62: #{residual_conv1d.1} parent=59 // pred_check_branch
          %585 = sbr.rel (%p583) target = $region64
        $region63: #{residual_conv1d.1} parent=59 // pred_region
          %s586 = sand.u32 %s146, 1
          %s587 = scalar_lea.sflag [#allocation4], %s586
          %s588 = sand.u32 %s146, 1
          %s589 = smul.addr %s588, 4
          %s590 = scalar_lea.vmem [#allocation10], %s589
          %591 = dma.done %s587, 64
        $region64: #{residual_conv1d.1} parent=59 // pred_fallthru
          _
      $region60: #{residual_conv1d.1} parent=5 // pred_fallthru
        _
    $region6: #{residual_conv1d.1} parent=1 // loop_footer
      %s24 = sadd.s32 1, %s20
    $region7: #{residual_conv1d.1} parent=1 // loop_footer_branch
      %19 = sbr.rel target = $region3
    $region8: #{residual_conv1d.1} parent=1 // loop_exit
      _
    %592 = vsyncpa [#allocation3], 1
    %s593 = scalar_lea.sflag [#allocation3], 1
    %594 = vsyncpa %s593, 1
    %595 = vsyncpa [#allocation6], 1
    %s596 = scalar_lea.sflag [#allocation6], 1
    %597 = vsyncpa %s596, 1
    %598 = vsyncpa [#allocation9], 1
    %599 = vsyncpa [#allocation4], 1
    %s600 = scalar_lea.sflag [#allocation4], 1
    %601 = vsyncpa %s600, 1

</llo_original>
